<compile_context>
chip_gen: v5e
topology: v5e:2x2
jax: 0.10.0
libtpu: 0.0.40
codegen_flags: <defaults>
</compile_context>

<pallas_src>
import math
import functools

import numpy as np
import jax
import jax.numpy as jnp
from jax.experimental import pallas as pl
from jax.experimental.pallas import tpu as pltpu


# ------------------------------ small helpers ------------------------------ #

def _round_up(x, m):
    return (x + m - 1) // m * m


def _apply_act(x, act):
    if act == 'relu':
        return jnp.maximum(x, 0.0)
    if act == 'tanh':
        return jnp.tanh(x)
    if act == 'elu':
        # exp(min(x,0)) avoids overflow on the discarded positive branch.
        return jnp.where(x > 0, x, jnp.exp(jnp.minimum(x, 0.0)) - 1.0)
    raise ValueError(f"unknown activation {act}")


# ------------------------------ Pallas kernel ------------------------------ #

def _fused_gemm_kernel(x_ref, w_ref, s_ref, b_ref, *rest, act, has_residual):
    """(tm, tk) @ (tk, tn) accumulated over the K grid axis, fused epilogue."""
    if has_residual:
        r_ref, o_ref, acc_ref = rest
    else:
        o_ref, acc_ref = rest
        r_ref = None

    @pl.when(pl.program_id(2) == 0)
    def _init():
        acc_ref[...] = jnp.zeros_like(acc_ref)

    acc_ref[...] += jnp.dot(x_ref[...], w_ref[...],
                            preferred_element_type=jnp.float32)

    @pl.when(pl.program_id(2) == pl.num_programs(2) - 1)
    def _finalize():
        y = acc_ref[...] * s_ref[...] + b_ref[...]      # folded BatchNorm affine
        if has_residual:
            y = y + r_ref[...].astype(jnp.float32)
        if act is not None:
            y = _apply_act(y, act)
        o_ref[...] = y.astype(o_ref.dtype)


def _fused_gemm(patches, weight, scale, bias, *, residual=None, act=None,
                out_dtype=jnp.bfloat16):
    """out = act( (patches @ weight) * scale + bias (+ residual) )

    patches : (M, K)            residual : (M, Cn) or None
    weight  : (K, Cn)  Cn % 128 == 0 (lane-dense output)
    scale/bias : (Cn,) f32 per-output-channel (folded BN, incl. 1/sqrt(fac))
    Returns (M, Cn) in out_dtype.
    """
    M, K = patches.shape
    K_w, Cn = weight.shape
    assert K_w == K and Cn % 128 == 0

    # --- tile selection ---------------------------------------------------- #
    tm = 512 if M >= 1024 else (256 if M >= 512 else 128)
    M_pad = _round_up(M, tm)
    tn = 256 if Cn % 256 == 0 else 128
    if K <= 1024:
        K_pad = _round_up(K, 16)
        tk = K_pad
    else:
        K_pad = _round_up(K, 128)
        tk = next(c for c in (512, 384, 256, 128) if K_pad % c == 0)
    grid = (M_pad // tm, Cn // tn, K_pad // tk)

    # --- pad operands (zeros do not perturb the accumulation) -------------- #
    p = patches
    if (M_pad, K_pad) != (M, K):
        p = jnp.pad(p, ((0, M_pad - M), (0, K_pad - K)))
    w = weight if K_pad == K else jnp.pad(weight, ((0, K_pad - K), (0, 0)))
    p = p.astype(jnp.bfloat16)
    w = w.astype(jnp.bfloat16)
    sc = scale.reshape(1, Cn).astype(jnp.float32)
    bs = bias.reshape(1, Cn).astype(jnp.float32)

    in_specs = [
        pl.BlockSpec((tm, tk), lambda i, j, k: (i, k)),    # patch tile
        pl.BlockSpec((tk, tn), lambda i, j, k: (k, j)),    # weight tile
        pl.BlockSpec((1, tn), lambda i, j, k: (0, j)),     # bn scale
        pl.BlockSpec((1, tn), lambda i, j, k: (0, j)),     # bn bias
    ]
    args = [p, w, sc, bs]
    if residual is not None:
        r = residual
        if M_pad != M:
            r = jnp.pad(r, ((0, M_pad - M), (0, 0)))
        args.append(r.astype(jnp.bfloat16))
        in_specs.append(pl.BlockSpec((tm, tn), lambda i, j, k: (i, j)))

    kernel = functools.partial(_fused_gemm_kernel, act=act,
                               has_residual=residual is not None)
    out = pl.pallas_call(
        kernel,
        out_shape=jax.ShapeDtypeStruct((M_pad, Cn), out_dtype),
        grid=grid,
        in_specs=in_specs,
        out_specs=pl.BlockSpec((tm, tn), lambda i, j, k: (i, j)),
        scratch_shapes=[pltpu.VMEM((tm, tn), jnp.float32)],
        compiler_params=pltpu.CompilerParams(
            dimension_semantics=("parallel", "parallel", "arbitrary")),
    )(*args)
    return out[:M] if M_pad != M else out


# -------------------------------- JAX glue --------------------------------- #

def _im2col_3x3(x_nhwc, stride):
    """Build (N*Ho*Wo, 9*C) patch matrix for a 3x3, pad=1, stride=s conv."""
    N, H, W, C = x_nhwc.shape
    xp = jnp.pad(x_nhwc, ((0, 0), (1, 1), (1, 1), (0, 0)))
    cols = [xp[:, kh:kh + H, kw:kw + W, :]
            for kh in range(3) for kw in range(3)]
    patches = jnp.stack(cols, axis=3)                 # (N, H, W, 9, C)
    if stride > 1:
        patches = patches[:, ::stride, ::stride]
    _, Ho, Wo = patches.shape[:3]
    return patches.reshape(N * Ho * Wo, 9 * C), (N, Ho, Wo)


def _prep_w3x3(w_oihw, cn_pad):
    """(Cout, Cin, 3, 3) -> (9*Cin, Cn_pad) tap-major GEMM weight (zero-padded)."""
    Cout, Cin, KH, KW = w_oihw.shape
    w = jnp.transpose(w_oihw, (2, 3, 1, 0)).reshape(KH * KW * Cin, Cout)
    if cn_pad != Cout:
        w = jnp.pad(w, ((0, 0), (0, cn_pad - Cout)))
    return w


def _fold_bn(bn_params, eps):
    """Eval-mode BN -> per-channel (scale, bias)."""
    gamma, beta, mean, var = bn_params
    inv = gamma / jnp.sqrt(var + eps)
    return inv, beta - mean * inv


def _pad_vec(v, cn_pad):
    return jnp.pad(v, (0, cn_pad - v.shape[0])) if v.shape[0] != cn_pad else v


# ------------------------------ module wrapper ------------------------------ #

class BasicBlockBNPallas:
    """Pallas re-implementation of BasicBlock_BN (eval-mode BatchNorm)."""
    expansion = 1

    def __init__(self, in_planes, planes, stride=1, scaled=False, act='relu',
                 scaling_fac=1.0, bias=False, key=None, eps=1e-5):
        assert not bias, "reference module is used with bias=False"
        if key is None:
            key = jax.random.PRNGKey(0)
        k1, k2, k3, kb1, kb2, kb3 = jax.random.split(key, 6)

        def conv_init(k, shape):
            fan_in = shape[1] * shape[2] * shape[3]
            bound = 1.0 / math.sqrt(fan_in)
            return jax.random.uniform(k, shape, jnp.float32, -bound, bound)

        def bn_init(k, c):
            kg, kb, km, kv = jax.random.split(k, 4)
            gamma = jax.random.uniform(kg, (c,), jnp.float32, 0.5, 1.5)
            beta = 0.1 * jax.random.normal(kb, (c,), jnp.float32)
            mean = 0.1 * jax.random.normal(km, (c,), jnp.float32)
            var = jax.random.uniform(kv, (c,), jnp.float32, 0.5, 1.5)
            return (gamma, beta, mean, var)

        self.w1 = conv_init(k1, (planes, in_planes, 3, 3))
        self.w2 = conv_init(k2, (planes, planes, 3, 3))
        self.bn1 = bn_init(kb1, planes)
        self.bn2 = bn_init(kb2, planes)
        self.w_ds = None
        self.bn3 = None
        if stride != 1 or in_planes != self.expansion * planes:
            self.w_ds = conv_init(k3, (self.expansion * planes, in_planes, 1, 1))
            self.bn3 = bn_init(kb3, self.expansion * planes)
        self.stride = stride
        self.scaled = scaled
        self.act = act
        self.scaling_fac = scaling_fac
        self.eps = eps

    def __call__(self, x_nchw):
        x = jnp.transpose(x_nchw, (0, 2, 3, 1)).astype(jnp.float32)   # NHWC
        N, H, W, Cin = x.shape
        planes = self.w1.shape[0]
        s = self.stride
        Cn = self.expansion * planes
        Cn_pad = _round_up(Cn, 128)            # lane-dense output channels
        x_bf = x.astype(jnp.bfloat16)

        # ---- conv1 (3x3, stride s) + bn1 + act, fused in one Pallas GEMM --- #
        p1, (_, Ho, Wo) = _im2col_3x3(x_bf, s)
        s1, b1 = _fold_bn(self.bn1, self.eps)
        out1 = _fused_gemm(p1, _prep_w3x3(self.w1, Cn_pad),
                           _pad_vec(s1, Cn_pad), _pad_vec(b1, Cn_pad),
                           act=self.act, out_dtype=jnp.bfloat16)
        M = N * Ho * Wo

        # ---- residual path ------------------------------------------------- #
        if self.w_ds is not None:
            xs = x_bf[:, ::s, ::s, :].reshape(M, Cin)
            w_ds = jnp.transpose(self.w_ds[:, :, 0, 0], (1, 0))        # (Cin, Cn)
            if Cn_pad != Cn:
                w_ds = jnp.pad(w_ds, ((0, 0), (0, Cn_pad - Cn)))
            s3, b3 = _fold_bn(self.bn3, self.eps)
            residual = _fused_gemm(xs, w_ds, _pad_vec(s3, Cn_pad),
                                   _pad_vec(b3, Cn_pad),
                                   out_dtype=jnp.bfloat16)
        else:
            xr = x_bf.reshape(M, Cin)
            residual = jnp.pad(xr, ((0, 0), (0, Cn_pad - Cin))) \
                if Cn_pad != Cin else xr

        # ---- conv2 (3x3) + bn2 [/sqrt(fac)] + residual + act --------------- #
        out1_nhwc = out1[:, :Cn].reshape(N, Ho, Wo, Cn)
        p2, _ = _im2col_3x3(out1_nhwc, 1)
        s2, b2 = _fold_bn(self.bn2, self.eps)
        if self.scaled:
            inv_fac = 1.0 / math.sqrt(self.scaling_fac)
            s2 = s2 * inv_fac
            b2 = b2 * inv_fac
        out = _fused_gemm(p2, _prep_w3x3(self.w2, Cn_pad),
                          _pad_vec(s2, Cn_pad), _pad_vec(b2, Cn_pad),
                          residual=residual, act=self.act,
                          out_dtype=jnp.float32)
        out = out[:, :Cn].reshape(N, Ho, Wo, Cn)
        return jnp.transpose(out, (0, 3, 1, 2))                        # NCHW


# ---------------------- pure-JAX reference (for check) ---------------------- #

def _ref_forward(block, x_nchw):
    x = x_nchw.astype(jnp.float32)

    def conv(inp, w, stride):
        pad = w.shape[2] // 2
        return jax.lax.conv_general_dilated(
            inp, w, (stride, stride), [(pad, pad), (pad, pad)],
            dimension_numbers=('NCHW', 'OIHW', 'NCHW'))

    def bn(inp, params):
        gamma, beta, mean, var = params
        inv = gamma / jnp.sqrt(var + block.eps)
        return inp * inv[None, :, None, None] + \
            (beta - mean * inv)[None, :, None, None]

    act = {'relu': jax.nn.relu, 'tanh': jnp.tanh, 'elu': jax.nn.elu}[block.act]
    out = act(bn(conv(x, block.w1, block.stride), block.bn1))
    out = bn(conv(out, block.w2, 1), block.bn2)
    if block.scaled:
        out = out / math.sqrt(block.scaling_fac)
    residual = x
    if block.w_ds is not None:
        residual = bn(conv(x, block.w_ds, block.stride), block.bn3)
    return act(out + residual)


# ----------------------------------- main ----------------------------------- #

if __name__ == "__main__":
    key = jax.random.PRNGKey(0)
    kx, kp1, kp2 = jax.random.split(key, 3)

    # PyTorch-style NCHW input: batch=2, channels=4, spatial=16x16
    x = jax.random.normal(kx, (2, 4, 16, 16), jnp.float32)

    # Config 1: identity shortcut (stride=1, in==out channels), relu.
    blk1 = BasicBlockBNPallas(in_planes=4, planes=4, stride=1,
                              scaled=False, act='relu', key=kp1)
    out1 = jax.block_until_ready(blk1(x))
    assert out1.shape == (2, 4, 16, 16)
    ref1 = _ref_forward(blk1, x)
    np.testing.assert_allclose(np.asarray(out1), np.asarray(ref1),
                               rtol=3e-2, atol=3e-2)

    # Config 2: downsample shortcut (stride=2, channel change), scaled + elu.
    blk2 = BasicBlockBNPallas(in_planes=4, planes=8, stride=2,
                              scaled=True, act='elu', scaling_fac=2.0, key=kp2)
    out2 = jax.block_until_ready(blk2(x))
    assert out2.shape == (2, 8, 8, 8)
    ref2 = _ref_forward(blk2, x)
    np.testing.assert_allclose(np.asarray(out2), np.asarray(ref2),
                               rtol=3e-2, atol=3e-2)

    print("KERNEL_OK")
</pallas_src>

<mosaic_0001>
module attributes {stable_mosaic.version = 11 : i64} {
  func.func @_fused_gemm_kernel(%arg0: i32, %arg1: i32, %arg2: i32, %arg3: memref<256x48xbf16, #tpu.memory_space<vmem>>, %arg4: memref<48x128xbf16, #tpu.memory_space<vmem>>, %arg5: memref<1x128xf32, #tpu.memory_space<vmem>>, %arg6: memref<1x128xf32, #tpu.memory_space<vmem>>, %arg7: memref<256x128xbf16, #tpu.memory_space<vmem>>, %arg8: memref<256x128xf32, #tpu.memory_space<vmem>>) attributes {dimension_semantics = [#tpu.dimension_semantics<parallel>, #tpu.dimension_semantics<parallel>, #tpu.dimension_semantics<arbitrary>], iteration_bounds = array<i64: 2, 1, 1>, scalar_prefetch = 0 : i64, scratch_operands = 1 : i64, tpu.core_type = #tpu.core_type<tc>, window_params = [{transform_indices = @transform_0, window_bounds = array<i64: 256, 48>}, {transform_indices = @transform_1, window_bounds = array<i64: 48, 128>}, {transform_indices = @transform_2, window_bounds = array<i64: 1, 128>}, {transform_indices = @transform_3, window_bounds = array<i64: 1, 128>}, {transform_indices = @transform_4, window_bounds = array<i64: 256, 128>}]} {
    %c0_i32 = arith.constant 0 : i32
    %0 = arith.cmpi eq, %arg2, %c0_i32 : i32
    %1 = arith.extui %0 : i1 to i32
    %c0_i32_0 = arith.constant 0 : i32
    %2 = arith.cmpi ne, %1, %c0_i32_0 : i32
    scf.if %2 {
      %cst_10 = arith.constant 0.000000e+00 : f32
      %12 = vector.broadcast %cst_10 : f32 to vector<256x128xf32>
      %c0_11 = arith.constant 0 : index
      %c0_12 = arith.constant 0 : index
      %13 = vector.load %arg8[%c0_11, %c0_12] : memref<256x128xf32, #tpu.memory_space<vmem>>, vector<256x128xf32>
      tpu.vector_store %arg8[%c0_11, %c0_12], %12 {strides = array<i32>} : memref<256x128xf32, #tpu.memory_space<vmem>>, vector<256x128xf32>,
    } else {
    }
    %c0 = arith.constant 0 : index
    %c0_1 = arith.constant 0 : index
    %3 = vector.load %arg8[%c0, %c0_1] : memref<256x128xf32, #tpu.memory_space<vmem>>, vector<256x128xf32>
    %c0_2 = arith.constant 0 : index
    %c0_3 = arith.constant 0 : index
    %4 = vector.load %arg3[%c0_2, %c0_3] : memref<256x48xbf16, #tpu.memory_space<vmem>>, vector<256x48xbf16>
    %c0_4 = arith.constant 0 : index
    %c0_5 = arith.constant 0 : index
    %5 = vector.load %arg4[%c0_4, %c0_5] : memref<48x128xbf16, #tpu.memory_space<vmem>>, vector<48x128xbf16>
    %cst = arith.constant dense<0.000000e+00> : vector<256x128xf32>
    %6 = tpu.matmul %4, %5, %cst {dimension_numbers = #tpu.dot_dimension_numbers<[1], [0], [0], [1], [0, 0, 1, 1], [], []>} : vector<256x48xbf16>, vector<48x128xbf16>, vector<256x128xf32> -> vector<256x128xf32>
    %7 = arith.addf %3, %6 : vector<256x128xf32>
    %c0_6 = arith.constant 0 : index
    %c0_7 = arith.constant 0 : index
    %8 = vector.load %arg8[%c0_6, %c0_7] : memref<256x128xf32, #tpu.memory_space<vmem>>, vector<256x128xf32>
    tpu.vector_store %arg8[%c0_6, %c0_7], %7 {strides = array<i32>} : memref<256x128xf32, #tpu.memory_space<vmem>>, vector<256x128xf32>,
    %c0_i32_8 = arith.constant 0 : i32
    %9 = arith.cmpi eq, %arg2, %c0_i32_8 : i32
    %10 = arith.extui %9 : i1 to i32
    %c0_i32_9 = arith.constant 0 : i32
    %11 = arith.cmpi ne, %10, %c0_i32_9 : i32
    scf.if %11 {
      %c0_10 = arith.constant 0 : index
      %c0_11 = arith.constant 0 : index
      %12 = vector.load %arg8[%c0_10, %c0_11] : memref<256x128xf32, #tpu.memory_space<vmem>>, vector<256x128xf32>
      %c0_12 = arith.constant 0 : index
      %c0_13 = arith.constant 0 : index
      %13 = vector.load %arg5[%c0_12, %c0_13] : memref<1x128xf32, #tpu.memory_space<vmem>>, vector<1x128xf32>
      %14 = vector.broadcast %13 : vector<1x128xf32> to vector<256x128xf32>
      %15 = arith.mulf %12, %14 : vector<256x128xf32>
      %c0_14 = arith.constant 0 : index
      %c0_15 = arith.constant 0 : index
      %16 = vector.load %arg6[%c0_14, %c0_15] : memref<1x128xf32, #tpu.memory_space<vmem>>, vector<1x128xf32>
      %17 = vector.broadcast %16 : vector<1x128xf32> to vector<256x128xf32>
      %18 = arith.addf %15, %17 : vector<256x128xf32>
      %cst_16 = arith.constant 0.000000e+00 : f32
      %19 = vector.broadcast %cst_16 : f32 to vector<256x128xf32>
      %20 = arith.maximumf %18, %19 : vector<256x128xf32>
      %21 = arith.truncf %20 : vector<256x128xf32> to vector<256x128xbf16>
      %c0_17 = arith.constant 0 : index
      %c0_18 = arith.constant 0 : index
      %22 = vector.load %arg7[%c0_17, %c0_18] : memref<256x128xbf16, #tpu.memory_space<vmem>>, vector<256x128xbf16>
      tpu.vector_store %arg7[%c0_17, %c0_18], %21 {strides = array<i32>} : memref<256x128xbf16, #tpu.memory_space<vmem>>, vector<256x128xbf16>,
    } else {
    }
    return
  }
  func.func @transform_0(%arg0: i32, %arg1: i32, %arg2: i32) -> (i32, i32) {
    %c0_i32 = arith.constant 0 : i32
    return %arg0, %arg2 : i32, i32
  }
  func.func @transform_1(%arg0: i32, %arg1: i32, %arg2: i32) -> (i32, i32) {
    %c0_i32 = arith.constant 0 : i32
    return %arg2, %arg1 : i32, i32
  }
  func.func @transform_2(%arg0: i32, %arg1: i32, %arg2: i32) -> (i32, i32) {
    %c0_i32 = arith.constant 0 : i32
    %c0_i32_0 = arith.constant 0 : i32
    return %c0_i32, %arg1 : i32, i32
  }
  func.func @transform_3(%arg0: i32, %arg1: i32, %arg2: i32) -> (i32, i32) {
    %c0_i32 = arith.constant 0 : i32
    %c0_i32_0 = arith.constant 0 : i32
    return %c0_i32, %arg1 : i32, i32
  }
  func.func @transform_4(%arg0: i32, %arg1: i32, %arg2: i32) -> (i32, i32) {
    %c0_i32 = arith.constant 0 : i32
    return %arg0, %arg1 : i32, i32
  }
}

</mosaic_0001>

<llo_original>
// kernel: tpu_custom_call.1
$region0: #{tpu_custom_call.1}
  #allocation0 [shape = 'u32[]', space=smem, size = 0x4, offset = 0x4, fixed_abs, tag = 'smem constant byte address 0x4 - core index']
  #allocation1 [shape = 'u32[72,128]{1,0:T(1,128)}', space=vmem, size = 0x9000, scoped, tag = 'internal scratch']
  #allocation2 [shape = 'f32[256,128]{1,0:T(8,128)}', space=vmem, size = 0x20000, scoped, tag = 'scratch operand']
  %s0 = inlined_call_operand.vmem [shape: bf16[512,48], index: 0, kind: input, shape index: {}]
  %s1 = inlined_call_operand.vmem [shape: bf16[48,128], index: 1, kind: input, shape index: {}]
  %s2 = inlined_call_operand.vmem [shape: f32[1,128], index: 2, kind: input, shape index: {}]
  %s3 = inlined_call_operand.vmem [shape: f32[1,128], index: 3, kind: input, shape index: {}]
  %s4 = inlined_call_operand.hbm [shape: bf16[512,128], index: 4, kind: output, shape index: {}]
  %s5 = sld [smem:[#allocation0]]
  $region57: #{tpu_custom_call.1} parent=0
    _
  %s7 = ssub.s32 1, %s5
  %s8 = scalar_select 0, %s7, %s5
  $region1: #{tpu_custom_call.1} parent=0
    #allocation3 [shape = 'u8[131072]{0}', space=vmem, size = 0x20000, scoped, tag = 'output window, operand 0']
    #allocation4 [shape = 's32[2]{0}', space=sflag, size = 0x8, scoped, tag = 'scoped memory for tpu_custom_call.1']
    %9 = vsyncpa [#allocation4], 0
    %s10 = scalar_lea.sflag [#allocation4], 1
    %11 = vsyncpa %s10, 0
    loop: start=0, step=1, limit=4
    $region2: #{tpu_custom_call.1} parent=1 // loop_pre_header
      _
    $region3: #{tpu_custom_call.1} parent=1 // loop_header
      %s13 = sphi 0, %s17
      %p14 = scmp.ge.s32.totalorder %s13, 4
      %s20 = sphi 0, %s39
      %s21 = sphi 0, %s35
      %s22 = sphi 0, %s31
      %s23 = sphi 0, %s20
      %s24 = sphi 0, %s21
      %s25 = sphi 0, %s22
      %s26 = sphi 0, %s23
      %s27 = sphi 0, %s24
      %s28 = sphi 0, %s25
      %s44 = sphi 0, %s46
      %s47 = sphi 0, %s44
      %s48 = sphi 0, %s47
      %s64 = sphi 0, %s48
      %s72 = sphi 0, %s74
      %s75 = sphi 0, %s72
      %s76 = sphi 0, %s75
      %s92 = sphi 0, %s76
      %s98 = sphi 0, %s100
      %s101 = sphi 0, %s98
      %s102 = sphi 0, %s101
      %s118 = sphi 0, %s102
      %s124 = sphi 0, %s126
      %s127 = sphi 0, %s124
      %s128 = sphi 0, %s127
      %s144 = sphi 0, %s128
      %s152 = sphi 0, %s154
      %s155 = sphi 0, %s152
      %s156 = sphi 0, %s155
      %s172 = sphi 0, %s156
    $region4: #{tpu_custom_call.1} parent=1 // loop_header_branch
      %16 = sbr.rel (%p14) target = $region8
    $region5: #{tpu_custom_call.1} parent=1 // loop_body
      %s18 = ssub.s32 %s13, 1
      %s19 = ssub.s32 %s13, 2
      %s29 = sadd.s32 1, %s22
      %p30 = scmp.ge.s32.totalorder %s29, 1
      %s31 = scalar_select %p30, 0, %s29
      %s32 = sadd.s32 1, %s21
      %s33 = scalar_select %p30, %s32, %s21
      %p34 = scmp.ge.s32.totalorder %s33, 1
      %s35 = scalar_select %p34, 0, %s33
      %s36 = sadd.s32 1, %s20
      %s37 = scalar_select %p34, %s36, %s20
      %p38 = scmp.ge.s32.totalorder %s37, 2
      %s39 = scalar_select %p38, 0, %s37
      %s40 = ssub.s32 %s20, %s39
      %s41 = ssub.s32 %s22, %s31
      %s42 = sor.u32 %s40, %s41
      %p43 = scmp.eq.s32.totalorder %s42, 0
      %s45 = sadd.s32 %s44, 1
      %s46 = scalar_select %p43, %s44, %s45
      %p49 = pneg %p43
      %p50 = scmp.eq.s32.totalorder %s13, 1
      %p51 = por %p49, %p50
      %p52 = scmp.ne.s32.totalorder %s44, %s47
      %p53 = scmp.eq.s32.totalorder %s13, 0
      %p54 = por %p52, %p53
      %p55 = scmp.ne.s32.totalorder %s44, %s47
      %p56 = scmp.eq.s32.totalorder %s18, 1
      %p57 = por %p55, %p56
      %p58 = scmp.ne.s32.totalorder %s47, %s48
      %p59 = scmp.eq.s32.totalorder %s18, 0
      %p60 = por %p58, %p59
      %p61 = scmp.ne.s32.totalorder %s47, %s48
      %p62 = scmp.eq.s32.totalorder %s19, 1
      %p63 = por %p61, %p62
      %p65 = scmp.ne.s32.totalorder %s48, %s64
      %p66 = scmp.eq.s32.totalorder %s19, 0
      %p67 = por %p65, %p66
      %s68 = ssub.s32 %s22, %s31
      %s69 = ssub.s32 %s21, %s35
      %s70 = sor.u32 %s68, %s69
      %p71 = scmp.eq.s32.totalorder %s70, 0
      %s73 = sadd.s32 %s72, 1
      %s74 = scalar_select %p71, %s72, %s73
      %p77 = pneg %p71
      %p78 = scmp.eq.s32.totalorder %s13, 1
      %p79 = por %p77, %p78
      %p80 = scmp.ne.s32.totalorder %s72, %s75
      %p81 = scmp.eq.s32.totalorder %s13, 0
      %p82 = por %p80, %p81
      %p83 = scmp.ne.s32.totalorder %s72, %s75
      %p84 = scmp.eq.s32.totalorder %s18, 1
      %p85 = por %p83, %p84
      %p86 = scmp.ne.s32.totalorder %s75, %s76
      %p87 = scmp.eq.s32.totalorder %s18, 0
      %p88 = por %p86, %p87
      %p89 = scmp.ne.s32.totalorder %s75, %s76
      %p90 = scmp.eq.s32.totalorder %s19, 1
      %p91 = por %p89, %p90
      %p93 = scmp.ne.s32.totalorder %s76, %s92
      %p94 = scmp.eq.s32.totalorder %s19, 0
      %p95 = por %p93, %p94
      %s96 = ssub.s32 %s21, %s35
      %p97 = scmp.eq.s32.totalorder %s96, 0
      %s99 = sadd.s32 %s98, 1
      %s100 = scalar_select %p97, %s98, %s99
      %p103 = pneg %p97
      %p104 = scmp.eq.s32.totalorder %s13, 1
      %p105 = por %p103, %p104
      %p106 = scmp.ne.s32.totalorder %s98, %s101
      %p107 = scmp.eq.s32.totalorder %s13, 0
      %p108 = por %p106, %p107
      %p109 = scmp.ne.s32.totalorder %s98, %s101
      %p110 = scmp.eq.s32.totalorder %s18, 1
      %p111 = por %p109, %p110
      %p112 = scmp.ne.s32.totalorder %s101, %s102
      %p113 = scmp.eq.s32.totalorder %s18, 0
      %p114 = por %p112, %p113
      %p115 = scmp.ne.s32.totalorder %s101, %s102
      %p116 = scmp.eq.s32.totalorder %s19, 1
      %p117 = por %p115, %p116
      %p119 = scmp.ne.s32.totalorder %s102, %s118
      %p120 = scmp.eq.s32.totalorder %s19, 0
      %p121 = por %p119, %p120
      %s122 = ssub.s32 %s21, %s35
      %p123 = scmp.eq.s32.totalorder %s122, 0
      %s125 = sadd.s32 %s124, 1
      %s126 = scalar_select %p123, %s124, %s125
      %p129 = pneg %p123
      %p130 = scmp.eq.s32.totalorder %s13, 1
      %p131 = por %p129, %p130
      %p132 = scmp.ne.s32.totalorder %s124, %s127
      %p133 = scmp.eq.s32.totalorder %s13, 0
      %p134 = por %p132, %p133
      %p135 = scmp.ne.s32.totalorder %s124, %s127
      %p136 = scmp.eq.s32.totalorder %s18, 1
      %p137 = por %p135, %p136
      %p138 = scmp.ne.s32.totalorder %s127, %s128
      %p139 = scmp.eq.s32.totalorder %s18, 0
      %p140 = por %p138, %p139
      %p141 = scmp.ne.s32.totalorder %s127, %s128
      %p142 = scmp.eq.s32.totalorder %s19, 1
      %p143 = por %p141, %p142
      %p145 = scmp.ne.s32.totalorder %s128, %s144
      %p146 = scmp.eq.s32.totalorder %s19, 0
      %p147 = por %p145, %p146
      %s148 = ssub.s32 %s20, %s39
      %s149 = ssub.s32 %s21, %s35
      %s150 = sor.u32 %s148, %s149
      %p151 = scmp.eq.s32.totalorder %s150, 0
      %s153 = sadd.s32 %s152, 1
      %s154 = scalar_select %p151, %s152, %s153
      %p157 = pneg %p151
      %p158 = scmp.eq.s32.totalorder %s13, 1
      %p159 = por %p157, %p158
      %p160 = scmp.ne.s32.totalorder %s152, %s155
      %p161 = scmp.eq.s32.totalorder %s13, 0
      %p162 = por %p160, %p161
      %p163 = scmp.ne.s32.totalorder %s152, %s155
      %p164 = scmp.eq.s32.totalorder %s18, 1
      %p165 = por %p163, %p164
      %p166 = scmp.ne.s32.totalorder %s155, %s156
      %p167 = scmp.eq.s32.totalorder %s18, 0
      %p168 = por %p166, %p167
      %p169 = scmp.ne.s32.totalorder %s155, %s156
      %p170 = scmp.eq.s32.totalorder %s19, 1
      %p171 = por %p169, %p170
      %p173 = scmp.ne.s32.totalorder %s156, %s172
      %p174 = scmp.eq.s32.totalorder %s19, 0
      %p175 = por %p173, %p174
      %p176 = scmp.le.s32.totalorder 1, %s13
      %p177 = scmp.lt.s32.totalorder %s13, 3
      %p178 = pnand %p176, %p177
      %p179 = pneg %p178
      // Predicated region
      $region9: #{tpu_custom_call.1} parent=5 // pred_check
        _
      $region10: #{tpu_custom_call.1} parent=5 // pred_check_branch
        %181 = sbr.rel (%p178) target = $region12
      $region11: #{tpu_custom_call.1} parent=5 // pred_region
        %s182 = ssub.s32 %s13, 1
        // Predicated region
        $region13: #{tpu_custom_call.1} parent=11 // pred_check
          %p183 = pneg %p88
        $region14: #{tpu_custom_call.1} parent=11 // pred_check_branch
          %185 = sbr.rel (%p183) target = $region16
        $region15: #{tpu_custom_call.1} parent=11 // pred_region
          %s186 = smul.u32 6, %s25
          %p187 = scmp.lt.s32.totalorder %s186, 5
          %s188 = scalar_select %p187, %s186, 5
          %p189 = scmp.lt.s32.totalorder %s24, 0
          %s190 = scalar_select %p189, %s24, 0
          %s191 = sadd.s32 %s190, %s188
          %s192 = smul.addr %s191, 4
          %s193 = scalar_lea.vmem %s1, %s192
          %s194 = smul.u32 6, %s25
        $region16: #{tpu_custom_call.1} parent=11 // pred_fallthru
          _
        // Predicated region
        $region17: #{tpu_custom_call.1} parent=11 // pred_check
          %p195 = pneg %p114
        $region18: #{tpu_custom_call.1} parent=11 // pred_check_branch
          %197 = sbr.rel (%p195) target = $region20
        $region19: #{tpu_custom_call.1} parent=11 // pred_region
          %p198 = scmp.lt.s32.totalorder %s24, 0
          %s199 = scalar_select %p198, %s24, 0
          %s200 = scalar_lea.vmem %s2, %s199
        $region20: #{tpu_custom_call.1} parent=11 // pred_fallthru
          _
        // Predicated region
        $region21: #{tpu_custom_call.1} parent=11 // pred_check
          %p201 = pneg %p140
        $region22: #{tpu_custom_call.1} parent=11 // pred_check_branch
          %203 = sbr.rel (%p201) target = $region24
        $region23: #{tpu_custom_call.1} parent=11 // pred_region
          %p204 = scmp.lt.s32.totalorder %s24, 0
          %s205 = scalar_select %p204, %s24, 0
          %s206 = scalar_lea.vmem %s3, %s205
        $region24: #{tpu_custom_call.1} parent=11 // pred_fallthru
          _
      $region12: #{tpu_custom_call.1} parent=5 // pred_fallthru
        _
      %p207 = scmp.lt.s32.totalorder %s13, 2
      // Predicated region
      $region25: #{tpu_custom_call.1} parent=5 // pred_check
        %p208 = pneg %p207
      $region26: #{tpu_custom_call.1} parent=5 // pred_check_branch
        %210 = sbr.rel (%p208) target = $region28
      $region27: #{tpu_custom_call.1} parent=5 // pred_region
        // Predicated region
        $region29: #{tpu_custom_call.1} parent=27 // pred_check
          %p211 = pneg %p54
        $region30: #{tpu_custom_call.1} parent=27 // pred_check_branch
          %213 = sbr.rel (%p211) target = $region32
        $region31: #{tpu_custom_call.1} parent=27 // pred_region
          %s214 = smul.u32 32, %s20
          %p215 = scmp.lt.s32.totalorder %s214, 63
          %s216 = scalar_select %p215, %s214, 63
          %p217 = scmp.lt.s32.totalorder %s22, 0
          %s218 = scalar_select %p217, %s22, 0
          %s219 = sadd.s32 %s218, %s216
          %s220 = smul.addr %s219, 4
          %s221 = scalar_lea.vmem %s0, %s220
          %s222 = smul.u32 32, %s20
        $region32: #{tpu_custom_call.1} parent=27 // pred_fallthru
          _
      $region28: #{tpu_custom_call.1} parent=5 // pred_fallthru
        _
      %p223 = scmp.le.s32.totalorder 1, %s13
      %p224 = scmp.lt.s32.totalorder %s13, 3
      %p225 = pnand %p223, %p224
      %p226 = pneg %p225
      // Predicated region
      $region33: #{tpu_custom_call.1} parent=5 // pred_check
        _
      $region34: #{tpu_custom_call.1} parent=5 // pred_check_branch
        %228 = sbr.rel (%p225) target = $region36
      $region35: #{tpu_custom_call.1} parent=5 // pred_region
        %s229 = ssub.s32 %s13, 1
        %s230 = smul.u32 32, %s23
        %p231 = scmp.lt.s32.totalorder %s230, 63
        %s232 = scalar_select %p231, %s230, 63
        %p233 = scmp.lt.s32.totalorder %s25, 0
        %s234 = scalar_select %p233, %s25, 0
        %s235 = sadd.s32 %s234, %s232
        %s236 = smul.addr %s235, 4
        %s237 = scalar_lea.vmem %s0, %s236
        %p238 = pneg %p60
        %p239 = pneg %p57
        %s240 = smul.u32 6, %s25
        %p241 = scmp.lt.s32.totalorder %s240, 5
        %s242 = scalar_select %p241, %s240, 5
        %p243 = scmp.lt.s32.totalorder %s24, 0
        %s244 = scalar_select %p243, %s24, 0
        %s245 = sadd.s32 %s244, %s242
        %s246 = smul.addr %s245, 4
        %s247 = scalar_lea.vmem %s1, %s246
        %p248 = pneg %p88
        %p249 = pneg %p85
        %p250 = scmp.lt.s32.totalorder %s24, 0
        %s251 = scalar_select %p250, %s24, 0
        %s252 = scalar_lea.vmem %s2, %s251
        %p253 = pneg %p114
        %p254 = pneg %p111
        %p255 = scmp.lt.s32.totalorder %s24, 0
        %s256 = scalar_select %p255, %s24, 0
        %s257 = scalar_lea.vmem %s3, %s256
        %p258 = pneg %p140
        %p259 = pneg %p137
        %p260 = pneg %p168
        %p261 = pneg %p165
        %s262 = sand.u32 %s155, 1
        %s263 = scalar_lea.sflag [#allocation4], %s262
        %s264 = sand.u32 %s155, 1
        %s265 = smul.addr %s264, 128
        %s266 = scalar_lea.vmem [#allocation3], %s265
        %s267 = smul.u32 32, %s23
        %p268 = scmp.lt.s32.totalorder %s267, 63
        %s269 = scalar_select %p268, %s267, 63
        %p270 = scmp.lt.s32.totalorder %s25, 0
        %s271 = scalar_select %p270, %s25, 0
        %s272 = sadd.s32 %s271, %s269
        %s273 = smul.addr %s272, 4
        %s274 = scalar_lea.vmem %s0, %s273
        %s275 = smul.u32 32, %s23
        %s276 = smul.u32 6, %s25
        %p277 = scmp.lt.s32.totalorder %s276, 5
        %s278 = scalar_select %p277, %s276, 5
        %p279 = scmp.lt.s32.totalorder %s24, 0
        %s280 = scalar_select %p279, %s24, 0
        %s281 = sadd.s32 %s280, %s278
        %s282 = smul.addr %s281, 4
        %s283 = scalar_lea.vmem %s1, %s282
        %s284 = smul.u32 6, %s25
        %p285 = scmp.lt.s32.totalorder %s24, 0
        %s286 = scalar_select %p285, %s24, 0
        %s287 = scalar_lea.vmem %s2, %s286
        %p288 = scmp.lt.s32.totalorder %s24, 0
        %s289 = scalar_select %p288, %s24, 0
        %s290 = scalar_lea.vmem %s3, %s289
        %s291 = smul.u32 32, %s23
        %p293 = scmp.eq.s32.totalorder %s25, 0
        // Predicated region
        $region37: #{tpu_custom_call.1} parent=35 // pred_check
          %p294 = pneg %p293
        $region38: #{tpu_custom_call.1} parent=35 // pred_check_branch
          %296 = sbr.rel (%p294) target = $region40
        $region39: #{tpu_custom_call.1} parent=35 // pred_region
          %297 = vst [vmem:[#allocation2] sm:$0xff] 0.0
          %298 = vst [vmem:[#allocation2 + $0x8] sm:$0xff] 0.0
          %299 = vst [vmem:[#allocation2 + $0x10] sm:$0xff] 0.0
          %300 = vst [vmem:[#allocation2 + $0x18] sm:$0xff] 0.0
          %301 = vst [vmem:[#allocation2 + $0x20] sm:$0xff] 0.0
          %302 = vst [vmem:[#allocation2 + $0x28] sm:$0xff] 0.0
          %303 = vst [vmem:[#allocation2 + $0x30] sm:$0xff] 0.0
          %304 = vst [vmem:[#allocation2 + $0x38] sm:$0xff] 0.0
          %305 = vst [vmem:[#allocation2 + $0x40] sm:$0xff] 0.0
          %306 = vst [vmem:[#allocation2 + $0x48] sm:$0xff] 0.0
          %307 = vst [vmem:[#allocation2 + $0x50] sm:$0xff] 0.0
          %308 = vst [vmem:[#allocation2 + $0x58] sm:$0xff] 0.0
          %309 = vst [vmem:[#allocation2 + $0x60] sm:$0xff] 0.0
          %310 = vst [vmem:[#allocation2 + $0x68] sm:$0xff] 0.0
          %311 = vst [vmem:[#allocation2 + $0x70] sm:$0xff] 0.0
          %312 = vst [vmem:[#allocation2 + $0x78] sm:$0xff] 0.0
          %313 = vst [vmem:[#allocation2 + $0x80] sm:$0xff] 0.0
          %314 = vst [vmem:[#allocation2 + $0x88] sm:$0xff] 0.0
          %315 = vst [vmem:[#allocation2 + $0x90] sm:$0xff] 0.0
          %316 = vst [vmem:[#allocation2 + $0x98] sm:$0xff] 0.0
          %317 = vst [vmem:[#allocation2 + $0xa0] sm:$0xff] 0.0
          %318 = vst [vmem:[#allocation2 + $0xa8] sm:$0xff] 0.0
          %319 = vst [vmem:[#allocation2 + $0xb0] sm:$0xff] 0.0
          %320 = vst [vmem:[#allocation2 + $0xb8] sm:$0xff] 0.0
          %321 = vst [vmem:[#allocation2 + $0xc0] sm:$0xff] 0.0
          %322 = vst [vmem:[#allocation2 + $0xc8] sm:$0xff] 0.0
          %323 = vst [vmem:[#allocation2 + $0xd0] sm:$0xff] 0.0
          %324 = vst [vmem:[#allocation2 + $0xd8] sm:$0xff] 0.0
          %325 = vst [vmem:[#allocation2 + $0xe0] sm:$0xff] 0.0
          %326 = vst [vmem:[#allocation2 + $0xe8] sm:$0xff] 0.0
          %327 = vst [vmem:[#allocation2 + $0xf0] sm:$0xff] 0.0
          %328 = vst [vmem:[#allocation2 + $0xf8] sm:$0xff] 0.0
        $region40: #{tpu_custom_call.1} parent=35 // pred_fallthru
          _
        %v329 = vld [vmem:[#allocation2] sm:$0xff]
        %v330 = vld [vmem:[#allocation2 + $0x8] sm:$0xff]
        %v331 = vld [vmem:[#allocation2 + $0x10] sm:$0xff]
        %v332 = vld [vmem:[#allocation2 + $0x18] sm:$0xff]
        %v333 = vld [vmem:[#allocation2 + $0x20] sm:$0xff]
        %v334 = vld [vmem:[#allocation2 + $0x28] sm:$0xff]
        %v335 = vld [vmem:[#allocation2 + $0x30] sm:$0xff]
        %v336 = vld [vmem:[#allocation2 + $0x38] sm:$0xff]
        %v337 = vld [vmem:[#allocation2 + $0x40] sm:$0xff]
        %v338 = vld [vmem:[#allocation2 + $0x48] sm:$0xff]
        %v339 = vld [vmem:[#allocation2 + $0x50] sm:$0xff]
        %v340 = vld [vmem:[#allocation2 + $0x58] sm:$0xff]
        %v341 = vld [vmem:[#allocation2 + $0x60] sm:$0xff]
        %v342 = vld [vmem:[#allocation2 + $0x68] sm:$0xff]
        %v343 = vld [vmem:[#allocation2 + $0x70] sm:$0xff]
        %v344 = vld [vmem:[#allocation2 + $0x78] sm:$0xff]
        %v345 = vld [vmem:[#allocation2 + $0x80] sm:$0xff]
        %v346 = vld [vmem:[#allocation2 + $0x88] sm:$0xff]
        %v347 = vld [vmem:[#allocation2 + $0x90] sm:$0xff]
        %v348 = vld [vmem:[#allocation2 + $0x98] sm:$0xff]
        %v349 = vld [vmem:[#allocation2 + $0xa0] sm:$0xff]
        %v350 = vld [vmem:[#allocation2 + $0xa8] sm:$0xff]
        %v351 = vld [vmem:[#allocation2 + $0xb0] sm:$0xff]
        %v352 = vld [vmem:[#allocation2 + $0xb8] sm:$0xff]
        %v353 = vld [vmem:[#allocation2 + $0xc0] sm:$0xff]
        %v354 = vld [vmem:[#allocation2 + $0xc8] sm:$0xff]
        %v355 = vld [vmem:[#allocation2 + $0xd0] sm:$0xff]
        %v356 = vld [vmem:[#allocation2 + $0xd8] sm:$0xff]
        %v357 = vld [vmem:[#allocation2 + $0xe0] sm:$0xff]
        %v358 = vld [vmem:[#allocation2 + $0xe8] sm:$0xff]
        %v359 = vld [vmem:[#allocation2 + $0xf0] sm:$0xff]
        %v360 = vld [vmem:[#allocation2 + $0xf8] sm:$0xff]
        %v361 = vld [vmem:[%s274] sm:$0xf]
        %v362 = vld [vmem:[%s274 + $0x4] sm:$0xf]
        %v363 = vld [vmem:[%s274 + $0x8] sm:$0xf]
        %v364 = vld [vmem:[%s274 + $0xc] sm:$0xf]
        %v365 = vld [vmem:[%s274 + $0x10] sm:$0xf]
        %v366 = vld [vmem:[%s274 + $0x14] sm:$0xf]
        %v367 = vld [vmem:[%s274 + $0x18] sm:$0xf]
        %v368 = vld [vmem:[%s274 + $0x1c] sm:$0xf]
        %v369 = vld [vmem:[%s274 + $0x20] sm:$0xf]
        %v370 = vld [vmem:[%s274 + $0x24] sm:$0xf]
        %v371 = vld [vmem:[%s274 + $0x28] sm:$0xf]
        %v372 = vld [vmem:[%s274 + $0x2c] sm:$0xf]
        %v373 = vld [vmem:[%s274 + $0x30] sm:$0xf]
        %v374 = vld [vmem:[%s274 + $0x34] sm:$0xf]
        %v375 = vld [vmem:[%s274 + $0x38] sm:$0xf]
        %v376 = vld [vmem:[%s274 + $0x3c] sm:$0xf]
        %v377 = vld [vmem:[%s274 + $0x40] sm:$0xf]
        %v378 = vld [vmem:[%s274 + $0x44] sm:$0xf]
        %v379 = vld [vmem:[%s274 + $0x48] sm:$0xf]
        %v380 = vld [vmem:[%s274 + $0x4c] sm:$0xf]
        %v381 = vld [vmem:[%s274 + $0x50] sm:$0xf]
        %v382 = vld [vmem:[%s274 + $0x54] sm:$0xf]
        %v383 = vld [vmem:[%s274 + $0x58] sm:$0xf]
        %v384 = vld [vmem:[%s274 + $0x5c] sm:$0xf]
        %v385 = vld [vmem:[%s274 + $0x60] sm:$0xf]
        %v386 = vld [vmem:[%s274 + $0x64] sm:$0xf]
        %v387 = vld [vmem:[%s274 + $0x68] sm:$0xf]
        %v388 = vld [vmem:[%s274 + $0x6c] sm:$0xf]
        %v389 = vld [vmem:[%s274 + $0x70] sm:$0xf]
        %v390 = vld [vmem:[%s274 + $0x74] sm:$0xf]
        %v391 = vld [vmem:[%s274 + $0x78] sm:$0xf]
        %v392 = vld [vmem:[%s274 + $0x7c] sm:$0xf]
        %v393 = vld [vmem:[%s283] sm:$0xf]
        %v394 = vld [vmem:[%s283 + $0x4] sm:$0xf]
        %v395 = vld [vmem:[%s283 + $0x8] sm:$0xf]
        %v396 = vld [vmem:[%s283 + $0xc] sm:$0xf]
        %v397 = vld [vmem:[%s283 + $0x10] sm:$0xf]
        %v398 = vld [vmem:[%s283 + $0x14] sm:$0xf]
        %v431 = vunpack.c.l.b16 %v361
        %v432 = vunpack.c.l.b16 %v362
        %v433 = vunpack.c.l.b16 %v363
        %v434 = vunpack.c.l.b16 %v364
        %v435 = vunpack.c.l.b16 %v365
        %v436 = vunpack.c.l.b16 %v366
        %v437 = vunpack.c.l.b16 %v367
        %v438 = vunpack.c.l.b16 %v368
        %v439 = vunpack.c.l.b16 %v369
        %v440 = vunpack.c.l.b16 %v370
        %v441 = vunpack.c.l.b16 %v371
        %v442 = vunpack.c.l.b16 %v372
        %v443 = vunpack.c.l.b16 %v373
        %v444 = vunpack.c.l.b16 %v374
        %v445 = vunpack.c.l.b16 %v375
        %v446 = vunpack.c.l.b16 %v376
        %v447 = vunpack.c.l.b16 %v377
        %v448 = vunpack.c.l.b16 %v378
        %v449 = vunpack.c.l.b16 %v379
        %v450 = vunpack.c.l.b16 %v380
        %v451 = vunpack.c.l.b16 %v381
        %v452 = vunpack.c.l.b16 %v382
        %v453 = vunpack.c.l.b16 %v383
        %v454 = vunpack.c.l.b16 %v384
        %v455 = vunpack.c.l.b16 %v385
        %v456 = vunpack.c.l.b16 %v386
        %v457 = vunpack.c.l.b16 %v387
        %v458 = vunpack.c.l.b16 %v388
        %v459 = vunpack.c.l.b16 %v389
        %v460 = vunpack.c.l.b16 %v390
        %v461 = vunpack.c.l.b16 %v391
        %v462 = vunpack.c.l.b16 %v392
        %v463 = vpack.c.b16 %v432, %v431
        %v464 = vpack.c.b16 %v434, %v433
        %v465 = vpack.c.b16 %v436, %v435
        %v466 = vpack.c.b16 %v438, %v437
        %v467 = vpack.c.b16 %v440, %v439
        %v468 = vpack.c.b16 %v442, %v441
        %v469 = vpack.c.b16 %v444, %v443
        %v470 = vpack.c.b16 %v446, %v445
        %v471 = vpack.c.b16 %v448, %v447
        %v472 = vpack.c.b16 %v450, %v449
        %v473 = vpack.c.b16 %v452, %v451
        %v474 = vpack.c.b16 %v454, %v453
        %v475 = vpack.c.b16 %v456, %v455
        %v476 = vpack.c.b16 %v458, %v457
        %v477 = vpack.c.b16 %v460, %v459
        %v478 = vpack.c.b16 %v462, %v461
        %v485 = vunpack.c.l.b16 %v393
        %v486 = vunpack.c.l.b16 %v394
        %v487 = vunpack.c.l.b16 %v395
        %v488 = vunpack.c.l.b16 %v396
        %v489 = vunpack.c.l.b16 %v397
        %v490 = vunpack.c.l.b16 %v398
        %v491 = vpack.c.b16 %v486, %v485
        %v492 = vpack.c.b16 %v488, %v487
        %v493 = vpack.c.b16 %v490, %v489
        %vm497 = vcmask 392192
        %v499 = vsel %vm497, %v463, 0
        %v502 = vsel %vm497, %v464, 0
        %v505 = vsel %vm497, %v465, 0
        %v508 = vsel %vm497, %v466, 0
        %v511 = vsel %vm497, %v467, 0
        %v514 = vsel %vm497, %v468, 0
        %v517 = vsel %vm497, %v469, 0
        %v520 = vsel %vm497, %v470, 0
        %v523 = vsel %vm497, %v471, 0
        %v526 = vsel %vm497, %v472, 0
        %v529 = vsel %vm497, %v473, 0
        %v532 = vsel %vm497, %v474, 0
        %v535 = vsel %vm497, %v475, 0
        %v538 = vsel %vm497, %v476, 0
        %v541 = vsel %vm497, %v477, 0
        %v544 = vsel %vm497, %v478, 0
        %546 = vmatpush.bf16.msra.mxu0 0
        %547 = vmatpush.bf16.msra.mxu0 0
        %548 = vmatpush.bf16.msra.mxu0 0
        %549 = vmatpush.bf16.msra.mxu0 0
        %550 = vmatpush.bf16.msra.mxu0 0
        %551 = vmatpush.bf16.msra.mxu0 %v493
        %552 = vmatpush.bf16.msra.mxu0 %v492
        %553 = vmatpush.bf16.msra.mxu0 %v491
        %554 = vmatmul.bf16.gmra.mxu0 %v499
        %v555 = vpop.f32.mrf.mxu0
        %v556 = vadd.f32 0.0, %v555
        %v557 = vpop.f32.mrf.mxu0
        %v558 = vadd.f32 0.0, %v557
        %559 = vmatmul.bf16.gmra.mxu0 %v502
        %v560 = vpop.f32.mrf.mxu0
        %v561 = vadd.f32 0.0, %v560
        %v562 = vpop.f32.mrf.mxu0
        %v563 = vadd.f32 0.0, %v562
        %564 = vmatmul.bf16.gmra.mxu0 %v505
        %v565 = vpop.f32.mrf.mxu0
        %v566 = vadd.f32 0.0, %v565
        %v567 = vpop.f32.mrf.mxu0
        %v568 = vadd.f32 0.0, %v567
        %569 = vmatmul.bf16.gmra.mxu0 %v508
        %v570 = vpop.f32.mrf.mxu0
        %v571 = vadd.f32 0.0, %v570
        %v572 = vpop.f32.mrf.mxu0
        %v573 = vadd.f32 0.0, %v572
        %574 = vmatmul.bf16.gmra.mxu0 %v511
        %v575 = vpop.f32.mrf.mxu0
        %v576 = vadd.f32 0.0, %v575
        %v577 = vpop.f32.mrf.mxu0
        %v578 = vadd.f32 0.0, %v577
        %579 = vmatmul.bf16.gmra.mxu0 %v514
        %v580 = vpop.f32.mrf.mxu0
        %v581 = vadd.f32 0.0, %v580
        %v582 = vpop.f32.mrf.mxu0
        %v583 = vadd.f32 0.0, %v582
        %584 = vmatmul.bf16.gmra.mxu0 %v517
        %v585 = vpop.f32.mrf.mxu0
        %v586 = vadd.f32 0.0, %v585
        %v587 = vpop.f32.mrf.mxu0
        %v588 = vadd.f32 0.0, %v587
        %589 = vmatmul.bf16.gmra.mxu0 %v520
        %v590 = vpop.f32.mrf.mxu0
        %v591 = vadd.f32 0.0, %v590
        %v592 = vpop.f32.mrf.mxu0
        %v593 = vadd.f32 0.0, %v592
        %594 = vmatmul.bf16.gmra.mxu0 %v523
        %v595 = vpop.f32.mrf.mxu0
        %v596 = vadd.f32 0.0, %v595
        %v597 = vpop.f32.mrf.mxu0
        %v598 = vadd.f32 0.0, %v597
        %599 = vmatmul.bf16.gmra.mxu0 %v526
        %v600 = vpop.f32.mrf.mxu0
        %v601 = vadd.f32 0.0, %v600
        %v602 = vpop.f32.mrf.mxu0
        %v603 = vadd.f32 0.0, %v602
        %604 = vmatmul.bf16.gmra.mxu0 %v529
        %v605 = vpop.f32.mrf.mxu0
        %v606 = vadd.f32 0.0, %v605
        %v607 = vpop.f32.mrf.mxu0
        %v608 = vadd.f32 0.0, %v607
        %609 = vmatmul.bf16.gmra.mxu0 %v532
        %v610 = vpop.f32.mrf.mxu0
        %v611 = vadd.f32 0.0, %v610
        %v612 = vpop.f32.mrf.mxu0
        %v613 = vadd.f32 0.0, %v612
        %614 = vmatmul.bf16.gmra.mxu0 %v535
        %v615 = vpop.f32.mrf.mxu0
        %v616 = vadd.f32 0.0, %v615
        %v617 = vpop.f32.mrf.mxu0
        %v618 = vadd.f32 0.0, %v617
        %619 = vmatmul.bf16.gmra.mxu0 %v538
        %v620 = vpop.f32.mrf.mxu0
        %v621 = vadd.f32 0.0, %v620
        %v622 = vpop.f32.mrf.mxu0
        %v623 = vadd.f32 0.0, %v622
        %624 = vmatmul.bf16.gmra.mxu0 %v541
        %v625 = vpop.f32.mrf.mxu0
        %v626 = vadd.f32 0.0, %v625
        %v627 = vpop.f32.mrf.mxu0
        %v628 = vadd.f32 0.0, %v627
        %629 = vmatmul.bf16.gmra.mxu0 %v544
        %v630 = vpop.f32.mrf.mxu0
        %v631 = vadd.f32 0.0, %v630
        %v632 = vpop.f32.mrf.mxu0
        %v633 = vadd.f32 0.0, %v632
        %634 = vdwg.mxu0
        %v635 = vadd.f32 %v329, %v556
        %v636 = vadd.f32 %v330, %v558
        %v637 = vadd.f32 %v331, %v561
        %v638 = vadd.f32 %v332, %v563
        %v639 = vadd.f32 %v333, %v566
        %v640 = vadd.f32 %v334, %v568
        %v641 = vadd.f32 %v335, %v571
        %v642 = vadd.f32 %v336, %v573
        %v643 = vadd.f32 %v337, %v576
        %v644 = vadd.f32 %v338, %v578
        %v645 = vadd.f32 %v339, %v581
        %v646 = vadd.f32 %v340, %v583
        %v647 = vadd.f32 %v341, %v586
        %v648 = vadd.f32 %v342, %v588
        %v649 = vadd.f32 %v343, %v591
        %v650 = vadd.f32 %v344, %v593
        %v651 = vadd.f32 %v345, %v596
        %v652 = vadd.f32 %v346, %v598
        %v653 = vadd.f32 %v347, %v601
        %v654 = vadd.f32 %v348, %v603
        %v655 = vadd.f32 %v349, %v606
        %v656 = vadd.f32 %v350, %v608
        %v657 = vadd.f32 %v351, %v611
        %v658 = vadd.f32 %v352, %v613
        %v659 = vadd.f32 %v353, %v616
        %v660 = vadd.f32 %v354, %v618
        %v661 = vadd.f32 %v355, %v621
        %v662 = vadd.f32 %v356, %v623
        %v663 = vadd.f32 %v357, %v626
        %v664 = vadd.f32 %v358, %v628
        %v665 = vadd.f32 %v359, %v631
        %v666 = vadd.f32 %v360, %v633
        %667 = vst [vmem:[#allocation2] sm:$0xff] %v635
        %668 = vst [vmem:[#allocation2 + $0x8] sm:$0xff] %v636
        %669 = vst [vmem:[#allocation2 + $0x10] sm:$0xff] %v637
        %670 = vst [vmem:[#allocation2 + $0x18] sm:$0xff] %v638
        %671 = vst [vmem:[#allocation2 + $0x20] sm:$0xff] %v639
        %672 = vst [vmem:[#allocation2 + $0x28] sm:$0xff] %v640
        %673 = vst [vmem:[#allocation2 + $0x30] sm:$0xff] %v641
        %674 = vst [vmem:[#allocation2 + $0x38] sm:$0xff] %v642
        %675 = vst [vmem:[#allocation2 + $0x40] sm:$0xff] %v643
        %676 = vst [vmem:[#allocation2 + $0x48] sm:$0xff] %v644
        %677 = vst [vmem:[#allocation2 + $0x50] sm:$0xff] %v645
        %678 = vst [vmem:[#allocation2 + $0x58] sm:$0xff] %v646
        %679 = vst [vmem:[#allocation2 + $0x60] sm:$0xff] %v647
        %680 = vst [vmem:[#allocation2 + $0x68] sm:$0xff] %v648
        %681 = vst [vmem:[#allocation2 + $0x70] sm:$0xff] %v649
        %682 = vst [vmem:[#allocation2 + $0x78] sm:$0xff] %v650
        %683 = vst [vmem:[#allocation2 + $0x80] sm:$0xff] %v651
        %684 = vst [vmem:[#allocation2 + $0x88] sm:$0xff] %v652
        %685 = vst [vmem:[#allocation2 + $0x90] sm:$0xff] %v653
        %686 = vst [vmem:[#allocation2 + $0x98] sm:$0xff] %v654
        %687 = vst [vmem:[#allocation2 + $0xa0] sm:$0xff] %v655
        %688 = vst [vmem:[#allocation2 + $0xa8] sm:$0xff] %v656
        %689 = vst [vmem:[#allocation2 + $0xb0] sm:$0xff] %v657
        %690 = vst [vmem:[#allocation2 + $0xb8] sm:$0xff] %v658
        %691 = vst [vmem:[#allocation2 + $0xc0] sm:$0xff] %v659
        %692 = vst [vmem:[#allocation2 + $0xc8] sm:$0xff] %v660
        %693 = vst [vmem:[#allocation2 + $0xd0] sm:$0xff] %v661
        %694 = vst [vmem:[#allocation2 + $0xd8] sm:$0xff] %v662
        %695 = vst [vmem:[#allocation2 + $0xe0] sm:$0xff] %v663
        %696 = vst [vmem:[#allocation2 + $0xe8] sm:$0xff] %v664
        %697 = vst [vmem:[#allocation2 + $0xf0] sm:$0xff] %v665
        %698 = vst [vmem:[#allocation2 + $0xf8] sm:$0xff] %v666
        // Predicated region
        $region41: #{tpu_custom_call.1} parent=35 // pred_check
          %p699 = pneg %p293
        $region42: #{tpu_custom_call.1} parent=35 // pred_check_branch
          %701 = sbr.rel (%p699) target = $region44
        $region43: #{tpu_custom_call.1} parent=35 // pred_region
          %v702 = vld [vmem:[#allocation2] sm:$0xff]
          %v703 = vld [vmem:[#allocation2 + $0x8] sm:$0xff]
          %v704 = vld [vmem:[#allocation2 + $0x10] sm:$0xff]
          %v705 = vld [vmem:[#allocation2 + $0x18] sm:$0xff]
          %v706 = vld [vmem:[#allocation2 + $0x20] sm:$0xff]
          %v707 = vld [vmem:[#allocation2 + $0x28] sm:$0xff]
          %v708 = vld [vmem:[#allocation2 + $0x30] sm:$0xff]
          %v709 = vld [vmem:[#allocation2 + $0x38] sm:$0xff]
          %v710 = vld [vmem:[#allocation2 + $0x40] sm:$0xff]
          %v711 = vld [vmem:[#allocation2 + $0x48] sm:$0xff]
          %v712 = vld [vmem:[#allocation2 + $0x50] sm:$0xff]
          %v713 = vld [vmem:[#allocation2 + $0x58] sm:$0xff]
          %v714 = vld [vmem:[#allocation2 + $0x60] sm:$0xff]
          %v715 = vld [vmem:[#allocation2 + $0x68] sm:$0xff]
          %v716 = vld [vmem:[#allocation2 + $0x70] sm:$0xff]
          %v717 = vld [vmem:[#allocation2 + $0x78] sm:$0xff]
          %v718 = vld [vmem:[#allocation2 + $0x80] sm:$0xff]
          %v719 = vld [vmem:[#allocation2 + $0x88] sm:$0xff]
          %v720 = vld [vmem:[#allocation2 + $0x90] sm:$0xff]
          %v721 = vld [vmem:[#allocation2 + $0x98] sm:$0xff]
          %v722 = vld [vmem:[#allocation2 + $0xa0] sm:$0xff]
          %v723 = vld [vmem:[#allocation2 + $0xa8] sm:$0xff]
          %v724 = vld [vmem:[#allocation2 + $0xb0] sm:$0xff]
          %v725 = vld [vmem:[#allocation2 + $0xb8] sm:$0xff]
          %v726 = vld [vmem:[#allocation2 + $0xc0] sm:$0xff]
          %v727 = vld [vmem:[#allocation2 + $0xc8] sm:$0xff]
          %v728 = vld [vmem:[#allocation2 + $0xd0] sm:$0xff]
          %v729 = vld [vmem:[#allocation2 + $0xd8] sm:$0xff]
          %v730 = vld [vmem:[#allocation2 + $0xe0] sm:$0xff]
          %v731 = vld [vmem:[#allocation2 + $0xe8] sm:$0xff]
          %v732 = vld [vmem:[#allocation2 + $0xf0] sm:$0xff]
          %v733 = vld [vmem:[#allocation2 + $0xf8] sm:$0xff]
          %v734 = vld [vmem:[%s287] sm:$0x1]
          %v736 = vperm.slane %v734, 0
          %v738 = vmul.f32 %v702, %v736
          %v739 = vmul.f32 %v703, %v736
          %v740 = vmul.f32 %v704, %v736
          %v741 = vmul.f32 %v705, %v736
          %v742 = vmul.f32 %v706, %v736
          %v743 = vmul.f32 %v707, %v736
          %v744 = vmul.f32 %v708, %v736
          %v745 = vmul.f32 %v709, %v736
          %v746 = vmul.f32 %v710, %v736
          %v747 = vmul.f32 %v711, %v736
          %v748 = vmul.f32 %v712, %v736
          %v749 = vmul.f32 %v713, %v736
          %v750 = vmul.f32 %v714, %v736
          %v751 = vmul.f32 %v715, %v736
          %v752 = vmul.f32 %v716, %v736
          %v753 = vmul.f32 %v717, %v736
          %v754 = vmul.f32 %v718, %v736
          %v755 = vmul.f32 %v719, %v736
          %v756 = vmul.f32 %v720, %v736
          %v757 = vmul.f32 %v721, %v736
          %v758 = vmul.f32 %v722, %v736
          %v759 = vmul.f32 %v723, %v736
          %v760 = vmul.f32 %v724, %v736
          %v761 = vmul.f32 %v725, %v736
          %v762 = vmul.f32 %v726, %v736
          %v763 = vmul.f32 %v727, %v736
          %v764 = vmul.f32 %v728, %v736
          %v765 = vmul.f32 %v729, %v736
          %v766 = vmul.f32 %v730, %v736
          %v767 = vmul.f32 %v731, %v736
          %v768 = vmul.f32 %v732, %v736
          %v769 = vmul.f32 %v733, %v736
          %v770 = vld [vmem:[%s290] sm:$0x1]
          %v772 = vperm.slane %v770, 0
          %v774 = vadd.f32 %v738, %v772
          %v775 = vadd.f32 %v739, %v772
          %v776 = vadd.f32 %v740, %v772
          %v777 = vadd.f32 %v741, %v772
          %v778 = vadd.f32 %v742, %v772
          %v779 = vadd.f32 %v743, %v772
          %v780 = vadd.f32 %v744, %v772
          %v781 = vadd.f32 %v745, %v772
          %v782 = vadd.f32 %v746, %v772
          %v783 = vadd.f32 %v747, %v772
          %v784 = vadd.f32 %v748, %v772
          %v785 = vadd.f32 %v749, %v772
          %v786 = vadd.f32 %v750, %v772
          %v787 = vadd.f32 %v751, %v772
          %v788 = vadd.f32 %v752, %v772
          %v789 = vadd.f32 %v753, %v772
          %v790 = vadd.f32 %v754, %v772
          %v791 = vadd.f32 %v755, %v772
          %v792 = vadd.f32 %v756, %v772
          %v793 = vadd.f32 %v757, %v772
          %v794 = vadd.f32 %v758, %v772
          %v795 = vadd.f32 %v759, %v772
          %v796 = vadd.f32 %v760, %v772
          %v797 = vadd.f32 %v761, %v772
          %v798 = vadd.f32 %v762, %v772
          %v799 = vadd.f32 %v763, %v772
          %v800 = vadd.f32 %v764, %v772
          %v801 = vadd.f32 %v765, %v772
          %v802 = vadd.f32 %v766, %v772
          %v803 = vadd.f32 %v767, %v772
          %v804 = vadd.f32 %v768, %v772
          %v805 = vadd.f32 %v769, %v772
          %v806 = vmax.f32 %v774, 0.0
          %v807 = vmax.f32 %v775, 0.0
          %v808 = vmax.f32 %v776, 0.0
          %v809 = vmax.f32 %v777, 0.0
          %v810 = vmax.f32 %v778, 0.0
          %v811 = vmax.f32 %v779, 0.0
          %v812 = vmax.f32 %v780, 0.0
          %v813 = vmax.f32 %v781, 0.0
          %v814 = vmax.f32 %v782, 0.0
          %v815 = vmax.f32 %v783, 0.0
          %v816 = vmax.f32 %v784, 0.0
          %v817 = vmax.f32 %v785, 0.0
          %v818 = vmax.f32 %v786, 0.0
          %v819 = vmax.f32 %v787, 0.0
          %v820 = vmax.f32 %v788, 0.0
          %v821 = vmax.f32 %v789, 0.0
          %v822 = vmax.f32 %v790, 0.0
          %v823 = vmax.f32 %v791, 0.0
          %v824 = vmax.f32 %v792, 0.0
          %v825 = vmax.f32 %v793, 0.0
          %v826 = vmax.f32 %v794, 0.0
          %v827 = vmax.f32 %v795, 0.0
          %v828 = vmax.f32 %v796, 0.0
          %v829 = vmax.f32 %v797, 0.0
          %v830 = vmax.f32 %v798, 0.0
          %v831 = vmax.f32 %v799, 0.0
          %v832 = vmax.f32 %v800, 0.0
          %v833 = vmax.f32 %v801, 0.0
          %v834 = vmax.f32 %v802, 0.0
          %v835 = vmax.f32 %v803, 0.0
          %v836 = vmax.f32 %v804, 0.0
          %v837 = vmax.f32 %v805, 0.0
          %v838 = vpack.c.bf16 %v806, %v806
          %v839 = vpack.c.bf16 %v807, %v807
          %v840 = vpack.c.bf16 %v808, %v808
          %v841 = vpack.c.bf16 %v809, %v809
          %v842 = vpack.c.bf16 %v810, %v810
          %v843 = vpack.c.bf16 %v811, %v811
          %v844 = vpack.c.bf16 %v812, %v812
          %v845 = vpack.c.bf16 %v813, %v813
          %v846 = vpack.c.bf16 %v814, %v814
          %v847 = vpack.c.bf16 %v815, %v815
          %v848 = vpack.c.bf16 %v816, %v816
          %v849 = vpack.c.bf16 %v817, %v817
          %v850 = vpack.c.bf16 %v818, %v818
          %v851 = vpack.c.bf16 %v819, %v819
          %v852 = vpack.c.bf16 %v820, %v820
          %v853 = vpack.c.bf16 %v821, %v821
          %v854 = vpack.c.bf16 %v822, %v822
          %v855 = vpack.c.bf16 %v823, %v823
          %v856 = vpack.c.bf16 %v824, %v824
          %v857 = vpack.c.bf16 %v825, %v825
          %v858 = vpack.c.bf16 %v826, %v826
          %v859 = vpack.c.bf16 %v827, %v827
          %v860 = vpack.c.bf16 %v828, %v828
          %v861 = vpack.c.bf16 %v829, %v829
          %v862 = vpack.c.bf16 %v830, %v830
          %v863 = vpack.c.bf16 %v831, %v831
          %v864 = vpack.c.bf16 %v832, %v832
          %v865 = vpack.c.bf16 %v833, %v833
          %v866 = vpack.c.bf16 %v834, %v834
          %v867 = vpack.c.bf16 %v835, %v835
          %v868 = vpack.c.bf16 %v836, %v836
          %v869 = vpack.c.bf16 %v837, %v837
          %870 = vst [vmem:[%s266] sm:$0xf] %v838
          %871 = vst [vmem:[%s266 + $0x4] sm:$0xf] %v839
          %872 = vst [vmem:[%s266 + $0x8] sm:$0xf] %v840
          %873 = vst [vmem:[%s266 + $0xc] sm:$0xf] %v841
          %874 = vst [vmem:[%s266 + $0x10] sm:$0xf] %v842
          %875 = vst [vmem:[%s266 + $0x14] sm:$0xf] %v843
          %876 = vst [vmem:[%s266 + $0x18] sm:$0xf] %v844
          %877 = vst [vmem:[%s266 + $0x1c] sm:$0xf] %v845
          %878 = vst [vmem:[%s266 + $0x20] sm:$0xf] %v846
          %879 = vst [vmem:[%s266 + $0x24] sm:$0xf] %v847
          %880 = vst [vmem:[%s266 + $0x28] sm:$0xf] %v848
          %881 = vst [vmem:[%s266 + $0x2c] sm:$0xf] %v849
          %882 = vst [vmem:[%s266 + $0x30] sm:$0xf] %v850
          %883 = vst [vmem:[%s266 + $0x34] sm:$0xf] %v851
          %884 = vst [vmem:[%s266 + $0x38] sm:$0xf] %v852
          %885 = vst [vmem:[%s266 + $0x3c] sm:$0xf] %v853
          %886 = vst [vmem:[%s266 + $0x40] sm:$0xf] %v854
          %887 = vst [vmem:[%s266 + $0x44] sm:$0xf] %v855
          %888 = vst [vmem:[%s266 + $0x48] sm:$0xf] %v856
          %889 = vst [vmem:[%s266 + $0x4c] sm:$0xf] %v857
          %890 = vst [vmem:[%s266 + $0x50] sm:$0xf] %v858
          %891 = vst [vmem:[%s266 + $0x54] sm:$0xf] %v859
          %892 = vst [vmem:[%s266 + $0x58] sm:$0xf] %v860
          %893 = vst [vmem:[%s266 + $0x5c] sm:$0xf] %v861
          %894 = vst [vmem:[%s266 + $0x60] sm:$0xf] %v862
          %895 = vst [vmem:[%s266 + $0x64] sm:$0xf] %v863
          %896 = vst [vmem:[%s266 + $0x68] sm:$0xf] %v864
          %897 = vst [vmem:[%s266 + $0x6c] sm:$0xf] %v865
          %898 = vst [vmem:[%s266 + $0x70] sm:$0xf] %v866
          %899 = vst [vmem:[%s266 + $0x74] sm:$0xf] %v867
          %900 = vst [vmem:[%s266 + $0x78] sm:$0xf] %v868
          %901 = vst [vmem:[%s266 + $0x7c] sm:$0xf] %v869
        $region44: #{tpu_custom_call.1} parent=35 // pred_fallthru
          _
        %s902 = sand.u32 %s155, 1
        %s903 = scalar_lea.sflag [#allocation4], %s902
        %s904 = sand.u32 %s155, 1
        %s905 = smul.addr %s904, 128
        %s906 = scalar_lea.vmem [#allocation3], %s905
        // Predicated region
        $region45: #{tpu_custom_call.1} parent=35 // pred_check
          %p907 = pneg %p165
        $region46: #{tpu_custom_call.1} parent=35 // pred_check_branch
          %909 = sbr.rel (%p907) target = $region48
        $region47: #{tpu_custom_call.1} parent=35 // pred_region
          %s910 = smul.u32 32, %s23
          %912 = vsyncadd %s903, 0
          %s913 = sadd.s32 %s24, %s910
          %s914 = smul.addr %s913, 4
          %s915 = scalar_lea.hbm %s4, %s914
          %s916 = sshll.u32 %s906, 4
          %s917 = int_to_ptr.vmem [resolvable:$true] %s916
          %s918 = sshll.u32 %s915, 4
          %s919 = int_to_ptr.hbm [resolvable:$true] %s918
          %924 = dma.vmem_to_hbm [thread:$0]  %s917, 2048, %s919, %s903, 64, 64, 4
        $region48: #{tpu_custom_call.1} parent=35 // pred_fallthru
          _
      $region36: #{tpu_custom_call.1} parent=5 // pred_fallthru
        _
      %p925 = scmp.le.s32.totalorder 2, %s13
      // Predicated region
      $region49: #{tpu_custom_call.1} parent=5 // pred_check
        %p926 = pneg %p925
      $region50: #{tpu_custom_call.1} parent=5 // pred_check_branch
        %928 = sbr.rel (%p926) target = $region52
      $region51: #{tpu_custom_call.1} parent=5 // pred_region
        %s929 = ssub.s32 %s13, 2
        // Predicated region
        $region53: #{tpu_custom_call.1} parent=51 // pred_check
          %p930 = pneg %p171
        $region54: #{tpu_custom_call.1} parent=51 // pred_check_branch
          %932 = sbr.rel (%p930) target = $region56
        $region55: #{tpu_custom_call.1} parent=51 // pred_region
          %s933 = sand.u32 %s156, 1
          %s934 = scalar_lea.sflag [#allocation4], %s933
          %s935 = sand.u32 %s156, 1
          %s936 = smul.addr %s935, 128
          %s937 = scalar_lea.vmem [#allocation3], %s936
          %939 = dma.done %s934, 2048
        $region56: #{tpu_custom_call.1} parent=51 // pred_fallthru
          _
      $region52: #{tpu_custom_call.1} parent=5 // pred_fallthru
        _
    $region6: #{tpu_custom_call.1} parent=1 // loop_footer
      %s17 = sadd.s32 1, %s13
    $region7: #{tpu_custom_call.1} parent=1 // loop_footer_branch
      %12 = sbr.rel target = $region3
    $region8: #{tpu_custom_call.1} parent=1 // loop_exit
      _
    %940 = vsyncpa [#allocation4], 1
    %s941 = scalar_lea.sflag [#allocation4], 1
    %942 = vsyncpa %s941, 1

</llo_original>
